<compile_context>
chip_gen: v7x
topology: tpu7x:2x2x1
jax: 0.10.0
libtpu: 0.0.40
codegen_flags: <defaults>
</compile_context>

<pallas_src>
import math

import jax
import jax.numpy as jnp
from jax.experimental import pallas as pl
from jax.experimental.pallas import tpu as pltpu

LOG_2PI = 1.8378770664093453
NEG = -1e20  # finite "minus infinity"; keeps NEG - NEG == 0 (no NaNs) in f32


def _round_up(x, m):
    return ((x + m - 1) // m) * m


def spatial_kernel(params_ref, tq_ref, lq_ref, mq_ref, dn_ref, tj_ref, lj_ref,
                   out_ref, m_s, l_s):
    """Grid = (batch n, query tile q, history tile j); j is streamed (online LSE).

    params (SMEM f32[3]):
      [ D * (-0.5*log(2*pi) - spatial_logstd),
        0.5 * exp(-2*spatial_logstd),
        1 / softplus(coeff_decay) ]
    """
    q = pl.program_id(1)
    j = pl.program_id(2)
    nj = pl.num_programs(2)

    T_q = tq_ref.shape[0]
    T_j = tj_ref.shape[1]

    d_csp = params_ref[0]
    half_iv = params_ref[1]
    inv_decay = params_ref[2]

    # ---- reset online-LSE state at the start of every history sweep --------
    @pl.when(j == 0)
    def _():
        m_s[...] = jnp.full((T_q, 1), NEG, jnp.float32)
        l_s[...] = jnp.zeros((T_q, 1), jnp.float32)

    row0 = q * T_q                       # global index of first query row
    col0 = j * T_j                       # global index of first history column
    is_active = col0 < row0 + T_q - 1    # tile holds at least one causal pair
    is_full = col0 + T_j <= row0         # every column strictly precedes every row

    @pl.when(is_active)
    def _():
        xq = lq_ref[...]                 # (T_q, Dp)  query locations (rows->sublanes)
        xj = lj_ref[...]                 # (Dp, T_j)  history locations (cols->lanes)
        tq = tq_ref[...]                 # (T_q, 1)
        tj = tj_ref[...]                 # (1, T_j)

        # pairwise Gaussian via squared-norm expansion on the (otherwise idle)
        # MXU; the exponential-decay row/col terms are folded into the rank-1
        # corrections so the slab path is: matmul + 2 adds + exp + row-sum.
        dot = jnp.dot(xq, xj, preferred_element_type=jnp.float32)   # (T_q, T_j)
        qn = jnp.sum(xq * xq, axis=-1, keepdims=True)               # (T_q, 1)
        jn = jnp.sum(xj * xj, axis=0, keepdims=True)                # (1, T_j)
        row_v = d_csp - half_iv * qn - tq * inv_decay               # (T_q, 1)
        col_v = tj * inv_decay - half_iv * jn                       # (1, T_j)
        s = 2.0 * half_iv * dot + row_v + col_v                     # (T_q, T_j)

        def online_update(x):
            m_cur = jnp.max(x, axis=-1, keepdims=True)
            m_new = jnp.maximum(m_s[...], m_cur)
            l_s[...] = (l_s[...] * jnp.exp(m_s[...] - m_new)
                        + jnp.sum(jnp.exp(x - m_new), axis=-1, keepdims=True))
            m_s[...] = m_new

        @pl.when(is_full)
        def _():                         # fully-causal tile: no masking needed
            online_update(s)

        @pl.when(jnp.logical_not(is_full))
        def _():                         # diagonal-band tile: mask via 1-D iotas
            row_g = jax.lax.broadcasted_iota(jnp.int32, (T_q, 1), 0) + row0
            col_g = jax.lax.broadcasted_iota(jnp.int32, (1, T_j), 1) + col0
            online_update(jnp.where(col_g < row_g, s, NEG))

    # ---- finalize this query tile on the last history tile -----------------
    @pl.when(j == nj - 1)
    def _():
        # numerator LSE minus the wrapper-hoisted decay-denominator LSE.
        # l_s > 0 for every row (row 0 accumulates exp(NEG-NEG)=1 terms), so
        # log(l_s) is finite and no NaN can leak into the masked product.
        loglik = (m_s[...] + jnp.log(l_s[...])) - dn_ref[...]
        pos = jax.lax.broadcasted_iota(jnp.int32, (T_q, 1), 0) + row0
        # global row 0 uses the wrapper-side first-event prior instead.
        out_ref[...] = jnp.where(pos == 0, 0.0, loglik * mq_ref[...])
        # TODO(synk): optional lane-dense (1, T_q) store via an XLU transpose;
        # skipped because this store runs only once per (n, q) pair.


def combined_forward(raw, event_times, spatial_locations, input_mask, t0, t1,
                     *, max_tq=256, max_tj=1024):
    """Returns (space_loglik, time_loglik), each shape (N,), like torch forward."""
    N, T = event_times.shape
    D = spatial_locations.shape[-1]

    sp_decay = math.log1p(math.exp(raw["coeff_decay"]))   # softplus(coeff_decay)
    lamb = math.log1p(math.exp(raw["lamb"]))              # softplus(lamb)
    c_sp = -0.5 * LOG_2PI - raw["spatial_logstd"]
    params = jnp.array(
        [D * c_sp,
         0.5 * math.exp(-2.0 * raw["spatial_logstd"]),
         1.0 / sp_decay], dtype=jnp.float32)

    times = jnp.asarray(event_times, jnp.float32)
    locs = jnp.asarray(spatial_locations, jnp.float32)
    mask = jnp.asarray(input_mask, jnp.float32)
    t0v = jnp.broadcast_to(jnp.asarray(t0, jnp.float32), (N,))
    t1v = jnp.broadcast_to(jnp.asarray(t1, jnp.float32), (N,))

    # ---- O(N*D) first-event prior N(mu0, exp(logstd0)) (wrapper epilogue) ---
    z0 = (locs[:, 0, :] - raw["mu0"]) * math.exp(-raw["logstd0"])
    loglik0 = jnp.sum(-0.5 * LOG_2PI - raw["logstd0"] - 0.5 * z0 * z0, axis=-1)

    # ---- O(N*T) hoisted decay denominator:  LSE_{j<i}((t_j - t_i)/decay) ----
    tau = times / sp_decay
    cum = jax.lax.cumlogsumexp(tau, axis=1)                         # inclusive
    excl = jnp.concatenate(
        [jnp.full((N, 1), -jnp.inf, jnp.float32), cum[:, :-1]], axis=1)
    denom = excl - tau
    denom = jnp.where(jnp.arange(T)[None, :] == 0, 0.0, denom)      # row 0 unused

    # ---- O(N) homogeneous-Poisson temporal model (entirely in the wrapper) --
    time_ll = jnp.sum(mask, axis=-1) * math.log(lamb) - (t1v - t0v) * lamb

    # Tile sizes: query rows padded to sublane multiples (8), history columns
    # to lane multiples (128) -> lane-dense slabs; sized well under the 48 MiB
    # scoped-VMEM budget (safe on v5e/v6e/v7x).
    T_q = max_tq if T >= max_tq else _round_up(T, 8)
    T_j = max_tj if T >= max_tj else _round_up(T, 128)
    if N == 1 and T > 8:
        # v7x megacore: keep N * Qt >= 2 so both TensorCores get work.
        T_q = min(T_q, _round_up((T + 1) // 2, 8))
    T_padq = _round_up(T, T_q)
    T_padj = _round_up(T, T_j)
    Qt = T_padq // T_q
    Jt = T_padj // T_j
    Dp = _round_up(D, 8)   # zero-pad spatial dim: dot products / norms unchanged

    def pad_t(x, tpad):
        pad = [(0, 0), (0, tpad - T)] + [(0, 0)] * (x.ndim - 2)
        return jnp.pad(x, pad)

    locs_p = jnp.pad(locs, ((0, 0), (0, 0), (0, Dp - D)))
    times_q = pad_t(times, T_padq).reshape(N, Qt, T_q, 1)
    mask_q = pad_t(mask, T_padq).reshape(N, Qt, T_q, 1)
    denom_q = pad_t(denom, T_padq).reshape(N, Qt, T_q, 1)
    locs_q = pad_t(locs_p, T_padq).reshape(N, Qt, T_q, Dp)
    times_j = pad_t(times, T_padj).reshape(N, Jt, 1, T_j)
    locs_j = jnp.transpose(pad_t(locs_p, T_padj), (0, 2, 1))        # (N, Dp, Tpj)
    locs_j = locs_j.reshape(N, Dp, Jt, T_j).transpose(0, 2, 1, 3)   # (N, Jt, Dp, T_j)

    smem = pl.BlockSpec(memory_space=pltpu.MemorySpace.SMEM)
    space_rows = pl.pallas_call(
        spatial_kernel,
        grid=(N, Qt, Jt),
        out_shape=jax.ShapeDtypeStruct((N, Qt, T_q, 1), jnp.float32),
        in_specs=[
            smem,                                                               # params
            pl.BlockSpec((None, None, T_q, 1), lambda n, q, j: (n, q, 0, 0)),   # times_q
            pl.BlockSpec((None, None, T_q, Dp), lambda n, q, j: (n, q, 0, 0)),  # locs_q
            pl.BlockSpec((None, None, T_q, 1), lambda n, q, j: (n, q, 0, 0)),   # mask_q
            pl.BlockSpec((None, None, T_q, 1), lambda n, q, j: (n, q, 0, 0)),   # denom_q
            pl.BlockSpec((None, None, 1, T_j), lambda n, q, j: (n, j, 0, 0)),   # times_j
            pl.BlockSpec((None, None, Dp, T_j), lambda n, q, j: (n, j, 0, 0)),  # locs_j
        ],
        out_specs=pl.BlockSpec((None, None, T_q, 1), lambda n, q, j: (n, q, 0, 0)),
        scratch_shapes=[pltpu.VMEM((T_q, 1), jnp.float32)] * 2,
        compiler_params=pltpu.CompilerParams(
            dimension_semantics=("parallel", "parallel", "arbitrary"),
            # <= 48 MiB leaves headroom on v7x (64 MiB VMEM); on v5e/v6e this
            # could be raised together with max_tj=2048.
            vmem_limit_bytes=48 * 1024 * 1024),
    )(params, times_q, locs_q, mask_q, denom_q, times_j, locs_j)

    space = loglik0 + jnp.sum(space_rows[..., 0], axis=(1, 2))
    return space, time_ll


def reference_forward(raw, event_times, spatial_locations, input_mask, t0, t1):
    """Pure-JAX reference mirroring the torch semantics of the two sub-models."""
    def softplus(x):
        return jnp.log1p(jnp.exp(x))

    def gauss(x, mean, log_std):
        return -0.5 * LOG_2PI - log_std - 0.5 * ((x - mean) * jnp.exp(-log_std)) ** 2

    N, T = event_times.shape
    s0 = spatial_locations[:, 0]
    loglik0 = gauss(s0, raw["mu0"], raw["logstd0"]).sum(-1)

    dt = event_times[:, :, None] - event_times[:, None, :]
    xi = spatial_locations[:, :, None, :]
    xj = spatial_locations[:, None, :, :]
    pair = gauss(xi, xj, raw["spatial_logstd"]).sum(-1)
    causal = jnp.arange(T)[None, :, None] > jnp.arange(T)[None, None, :]
    pair = jnp.where(causal, pair, NEG)
    dt_logdecay = jnp.where(causal, -dt / softplus(raw["coeff_decay"]), NEG)
    dt_logdecay = dt_logdecay - jax.scipy.special.logsumexp(
        dt_logdecay, axis=-1, keepdims=True)
    loglik = jax.scipy.special.logsumexp(pair + dt_logdecay, axis=-1)
    space = loglik0 + jnp.sum(loglik[:, 1:] * input_mask[:, 1:], axis=-1)

    lamb = softplus(raw["lamb"])
    time_ll = input_mask.sum(-1) * jnp.log(lamb) - (t1 - t0) * lamb
    return space, time_ll


if __name__ == "__main__":
    raw = dict(mu0=0.0, logstd0=0.0, coeff_decay=0.1,
               spatial_logstd=0.1, lamb=0.75)

    def make_inputs(key, N, T, D, t_end):
        k1, k2, k3 = jax.random.split(key, 3)
        deltas = jax.random.uniform(k1, (N, T), dtype=jnp.float32,
                                    minval=0.1, maxval=1.0)
        event_times = jnp.cumsum(deltas, axis=-1)                    # (N, T)
        locs = jax.random.normal(k2, (N, T, D), dtype=jnp.float32)
        lengths = jax.random.randint(k3, (N,), T // 2, T + 1)
        mask = (jnp.arange(T)[None, :] < lengths[:, None]).astype(jnp.float32)
        t0 = jnp.zeros((N,), jnp.float32)
        t1 = jnp.full((N,), t_end, jnp.float32)
        return event_times, locs, mask, t0, t1

    key = jax.random.PRNGKey(0)
    # (N, T, D, t_end, tile overrides): toy case, odd-D case, and a large case
    # run both with small tiles (exercises Qt>1, Jt>1, tile skipping and the
    # fully-causal fast path) and with the default tiles.
    configs = [
        (4, 16, 2, 20.0, {}),
        (2, 36, 3, 40.0, {}),
        (2, 520, 2, 400.0, dict(max_tq=128, max_tj=256)),
        (2, 520, 2, 400.0, {}),
    ]
    for idx, (N, T, D, t_end, tiles) in enumerate(configs):
        key, sub = jax.random.split(key)
        ev, locs, mask, t0, t1 = make_inputs(sub, N, T, D, t_end)

        space_ll, time_ll = combined_forward(raw, ev, locs, mask, t0, t1, **tiles)
        jax.block_until_ready((space_ll, time_ll))

        ref_space, ref_time = reference_forward(raw, ev, locs, mask, t0, t1)
        assert jnp.allclose(space_ll, ref_space, rtol=5e-4, atol=5e-3), (
            idx, space_ll, ref_space)
        assert jnp.allclose(time_ll, ref_time, rtol=5e-4, atol=5e-3), (
            idx, time_ll, ref_time)

    print("KERNEL_OK")
</pallas_src>

<mosaic_0001>
module attributes {stable_mosaic.version = 11 : i64} {
  func.func @spatial_kernel(%arg0: i32, %arg1: i32, %arg2: i32, %arg3: memref<3xf32, #tpu.memory_space<smem>>, %arg4: memref<1x1x16x1xf32, #tpu.memory_space<vmem>>, %arg5: memref<1x1x16x8xf32, #tpu.memory_space<vmem>>, %arg6: memref<1x1x16x1xf32, #tpu.memory_space<vmem>>, %arg7: memref<1x1x16x1xf32, #tpu.memory_space<vmem>>, %arg8: memref<1x1x1x128xf32, #tpu.memory_space<vmem>>, %arg9: memref<1x1x8x128xf32, #tpu.memory_space<vmem>>, %arg10: memref<1x1x16x1xf32, #tpu.memory_space<vmem>>, %arg11: memref<16x1xf32, #tpu.memory_space<vmem>>, %arg12: memref<16x1xf32, #tpu.memory_space<vmem>>) attributes {dimension_semantics = [#tpu.dimension_semantics<parallel>, #tpu.dimension_semantics<parallel>, #tpu.dimension_semantics<arbitrary>], iteration_bounds = array<i64: 4, 1, 1>, scalar_prefetch = 0 : i64, scratch_operands = 2 : i64, tpu.core_type = #tpu.core_type<tc>, window_params = [{transform_indices = @transform_0, window_bounds = array<i64: 3>}, {transform_indices = @transform_1, window_bounds = array<i64: 1, 1, 16, 1>}, {transform_indices = @transform_2, window_bounds = array<i64: 1, 1, 16, 8>}, {transform_indices = @transform_3, window_bounds = array<i64: 1, 1, 16, 1>}, {transform_indices = @transform_4, window_bounds = array<i64: 1, 1, 16, 1>}, {transform_indices = @transform_5, window_bounds = array<i64: 1, 1, 1, 128>}, {transform_indices = @transform_6, window_bounds = array<i64: 1, 1, 8, 128>}, {transform_indices = @transform_7, window_bounds = array<i64: 1, 1, 16, 1>}]} {
    %c0 = arith.constant 0 : index
    %0 = memref.load %arg3[%c0] : memref<3xf32, #tpu.memory_space<smem>>
    %c1 = arith.constant 1 : index
    %1 = memref.load %arg3[%c1] : memref<3xf32, #tpu.memory_space<smem>>
    %c2 = arith.constant 2 : index
    %2 = memref.load %arg3[%c2] : memref<3xf32, #tpu.memory_space<smem>>
    %c0_i32 = arith.constant 0 : i32
    %3 = arith.cmpi eq, %arg2, %c0_i32 : i32
    %4 = arith.extui %3 : i1 to i32
    %c0_i32_0 = arith.constant 0 : i32
    %5 = arith.cmpi ne, %4, %c0_i32_0 : i32
    scf.if %5 {
      %cst = arith.constant -1.000000e+20 : f32
      %18 = vector.broadcast %cst : f32 to vector<16x1xf32>
      %c0_6 = arith.constant 0 : index
      %c0_7 = arith.constant 0 : index
      %19 = vector.load %arg11[%c0_6, %c0_7] : memref<16x1xf32, #tpu.memory_space<vmem>>, vector<16x1xf32>
      tpu.vector_store %arg11[%c0_6, %c0_7], %18 {strides = array<i32>} : memref<16x1xf32, #tpu.memory_space<vmem>>, vector<16x1xf32>,
      %cst_8 = arith.constant 0.000000e+00 : f32
      %20 = vector.broadcast %cst_8 : f32 to vector<16x1xf32>
      %c0_9 = arith.constant 0 : index
      %c0_10 = arith.constant 0 : index
      %21 = vector.load %arg12[%c0_9, %c0_10] : memref<16x1xf32, #tpu.memory_space<vmem>>, vector<16x1xf32>
      tpu.vector_store %arg12[%c0_9, %c0_10], %20 {strides = array<i32>} : memref<16x1xf32, #tpu.memory_space<vmem>>, vector<16x1xf32>,
    } else {
    }
    %c16_i32 = arith.constant 16 : i32
    %6 = arith.muli %arg1, %c16_i32 : i32
    %c128_i32 = arith.constant 128 : i32
    %7 = arith.muli %arg2, %c128_i32 : i32
    %c16_i32_1 = arith.constant 16 : i32
    %8 = arith.addi %6, %c16_i32_1 : i32
    %c1_i32 = arith.constant 1 : i32
    %9 = arith.subi %8, %c1_i32 : i32
    %10 = arith.cmpi slt, %7, %9 : i32
    %c128_i32_2 = arith.constant 128 : i32
    %11 = arith.addi %7, %c128_i32_2 : i32
    %12 = arith.cmpi sle, %11, %6 : i32
    %13 = arith.extui %10 : i1 to i32
    %c0_i32_3 = arith.constant 0 : i32
    %14 = arith.cmpi ne, %13, %c0_i32_3 : i32
    scf.if %14 {
      %c0_6 = arith.constant 0 : index
      %c0_7 = arith.constant 0 : index
      %c0_8 = arith.constant 0 : index
      %c0_9 = arith.constant 0 : index
      %18 = vector.load %arg5[%c0_6, %c0_7, %c0_8, %c0_9] : memref<1x1x16x8xf32, #tpu.memory_space<vmem>>, vector<1x1x16x8xf32>
      %19 = vector.shape_cast %18 : vector<1x1x16x8xf32> to vector<16x8xf32>
      %c0_10 = arith.constant 0 : index
      %c0_11 = arith.constant 0 : index
      %c0_12 = arith.constant 0 : index
      %c0_13 = arith.constant 0 : index
      %20 = vector.load %arg9[%c0_10, %c0_11, %c0_12, %c0_13] : memref<1x1x8x128xf32, #tpu.memory_space<vmem>>, vector<1x1x8x128xf32>
      %21 = vector.shape_cast %20 : vector<1x1x8x128xf32> to vector<8x128xf32>
      %c0_14 = arith.constant 0 : index
      %c0_15 = arith.constant 0 : index
      %c0_16 = arith.constant 0 : index
      %c0_17 = arith.constant 0 : index
      %22 = vector.load %arg4[%c0_14, %c0_15, %c0_16, %c0_17] : memref<1x1x16x1xf32, #tpu.memory_space<vmem>>, vector<1x1x16x1xf32>
      %23 = vector.shape_cast %22 : vector<1x1x16x1xf32> to vector<16x1xf32>
      %c0_18 = arith.constant 0 : index
      %c0_19 = arith.constant 0 : index
      %c0_20 = arith.constant 0 : index
      %c0_21 = arith.constant 0 : index
      %24 = vector.load %arg8[%c0_18, %c0_19, %c0_20, %c0_21] : memref<1x1x1x128xf32, #tpu.memory_space<vmem>>, vector<1x1x1x128xf32>
      %25 = vector.shape_cast %24 : vector<1x1x1x128xf32> to vector<1x128xf32>
      %cst = arith.constant dense<0.000000e+00> : vector<16x128xf32>
      %26 = tpu.matmul %19, %21, %cst {dimension_numbers = #tpu.dot_dimension_numbers<[1], [0], [0], [1], [0, 0, 1, 1], [], []>} : vector<16x8xf32>, vector<8x128xf32>, vector<16x128xf32> -> vector<16x128xf32>
      %27 = arith.mulf %19, %19 : vector<16x8xf32>
      %cst_22 = arith.constant dense<0.000000e+00> : vector<16xf32>
      %28 = vector.multi_reduction <add>, %27, %cst_22 [1] : vector<16x8xf32> to vector<16xf32>
      %29 = vector.shape_cast %28 : vector<16xf32> to vector<16x1xf32>
      %30 = arith.mulf %21, %21 : vector<8x128xf32>
      %cst_23 = arith.constant dense<0.000000e+00> : vector<128xf32>
      %31 = vector.multi_reduction <add>, %30, %cst_23 [0] : vector<8x128xf32> to vector<128xf32>
      %32 = vector.shape_cast %31 : vector<128xf32> to vector<1x128xf32>
      %33 = vector.broadcast %1 : f32 to vector<16x1xf32>
      %34 = arith.mulf %33, %29 : vector<16x1xf32>
      %35 = vector.broadcast %0 : f32 to vector<16x1xf32>
      %36 = arith.subf %35, %34 : vector<16x1xf32>
      %37 = vector.broadcast %2 : f32 to vector<16x1xf32>
      %38 = arith.mulf %23, %37 : vector<16x1xf32>
      %39 = arith.subf %36, %38 : vector<16x1xf32>
      %40 = vector.broadcast %2 : f32 to vector<1x128xf32>
      %41 = arith.mulf %25, %40 : vector<1x128xf32>
      %42 = vector.broadcast %1 : f32 to vector<1x128xf32>
      %43 = arith.mulf %42, %32 : vector<1x128xf32>
      %44 = arith.subf %41, %43 : vector<1x128xf32>
      %cst_24 = arith.constant 2.000000e+00 : f32
      %45 = arith.mulf %cst_24, %1 : f32
      %46 = vector.broadcast %45 : f32 to vector<16x128xf32>
      %47 = arith.mulf %46, %26 : vector<16x128xf32>
      %48 = vector.broadcast %39 : vector<16x1xf32> to vector<16x128xf32>
      %49 = arith.addf %47, %48 : vector<16x128xf32>
      %50 = vector.broadcast %44 : vector<1x128xf32> to vector<16x128xf32>
      %51 = arith.addf %49, %50 : vector<16x128xf32>
      %52 = arith.extui %12 : i1 to i32
      %c0_i32_25 = arith.constant 0 : i32
      %53 = arith.cmpi ne, %52, %c0_i32_25 : i32
      scf.if %53 {
        %cst_27 = arith.constant dense<0xFF800000> : vector<16xf32>
        %57 = vector.multi_reduction <maximumf>, %51, %cst_27 [1] : vector<16x128xf32> to vector<16xf32>
        %58 = vector.shape_cast %57 : vector<16xf32> to vector<16x1xf32>
        %c0_28 = arith.constant 0 : index
        %c0_29 = arith.constant 0 : index
        %59 = vector.load %arg11[%c0_28, %c0_29] : memref<16x1xf32, #tpu.memory_space<vmem>>, vector<16x1xf32>
        %60 = arith.maximumf %59, %58 : vector<16x1xf32>
        %c0_30 = arith.constant 0 : index
        %c0_31 = arith.constant 0 : index
        %61 = vector.load %arg12[%c0_30, %c0_31] : memref<16x1xf32, #tpu.memory_space<vmem>>, vector<16x1xf32>
        %c0_32 = arith.constant 0 : index
        %c0_33 = arith.constant 0 : index
        %62 = vector.load %arg11[%c0_32, %c0_33] : memref<16x1xf32, #tpu.memory_space<vmem>>, vector<16x1xf32>
        %63 = arith.subf %62, %60 : vector<16x1xf32>
        %64 = math.exp %63 : vector<16x1xf32>
        %65 = arith.mulf %61, %64 : vector<16x1xf32>
        %66 = vector.broadcast %60 : vector<16x1xf32> to vector<16x128xf32>
        %67 = arith.subf %51, %66 : vector<16x128xf32>
        %68 = math.exp %67 : vector<16x128xf32>
        %cst_34 = arith.constant dense<0.000000e+00> : vector<16xf32>
        %69 = vector.multi_reduction <add>, %68, %cst_34 [1] : vector<16x128xf32> to vector<16xf32>
        %70 = vector.shape_cast %69 : vector<16xf32> to vector<16x1xf32>
        %71 = arith.addf %65, %70 : vector<16x1xf32>
        %c0_35 = arith.constant 0 : index
        %c0_36 = arith.constant 0 : index
        %72 = vector.load %arg12[%c0_35, %c0_36] : memref<16x1xf32, #tpu.memory_space<vmem>>, vector<16x1xf32>
        tpu.vector_store %arg12[%c0_35, %c0_36], %71 {strides = array<i32>} : memref<16x1xf32, #tpu.memory_space<vmem>>, vector<16x1xf32>,
        %c0_37 = arith.constant 0 : index
        %c0_38 = arith.constant 0 : index
        %73 = vector.load %arg11[%c0_37, %c0_38] : memref<16x1xf32, #tpu.memory_space<vmem>>, vector<16x1xf32>
        tpu.vector_store %arg11[%c0_37, %c0_38], %60 {strides = array<i32>} : memref<16x1xf32, #tpu.memory_space<vmem>>, vector<16x1xf32>,
      } else {
      }
      %true = arith.constant true
      %54 = arith.xori %12, %true : i1
      %55 = arith.extui %54 : i1 to i32
      %c0_i32_26 = arith.constant 0 : i32
      %56 = arith.cmpi ne, %55, %c0_i32_26 : i32
      scf.if %56 {
        %57 = tpu.iota {dimensions = array<i32: 0>} : vector<16x1xi32>
        %58 = vector.broadcast %6 : i32 to vector<16x1xi32>
        %59 = arith.addi %57, %58 : vector<16x1xi32>
        %60 = tpu.iota {dimensions = array<i32: 1>} : vector<1x128xi32>
        %61 = vector.broadcast %7 : i32 to vector<1x128xi32>
        %62 = arith.addi %60, %61 : vector<1x128xi32>
        %63 = vector.broadcast %62 : vector<1x128xi32> to vector<16x128xi32>
        %64 = vector.broadcast %59 : vector<16x1xi32> to vector<16x128xi32>
        %65 = arith.cmpi slt, %63, %64 : vector<16x128xi32>
        %cst_27 = arith.constant -1.000000e+20 : f32
        %66 = vector.broadcast %cst_27 : f32 to vector<16x128xf32>
        %67 = arith.select %65, %51, %66 : vector<16x128xi1>, vector<16x128xf32>
        %cst_28 = arith.constant dense<0xFF800000> : vector<16xf32>
        %68 = vector.multi_reduction <maximumf>, %67, %cst_28 [1] : vector<16x128xf32> to vector<16xf32>
        %69 = vector.shape_cast %68 : vector<16xf32> to vector<16x1xf32>
        %c0_29 = arith.constant 0 : index
        %c0_30 = arith.constant 0 : index
        %70 = vector.load %arg11[%c0_29, %c0_30] : memref<16x1xf32, #tpu.memory_space<vmem>>, vector<16x1xf32>
        %71 = arith.maximumf %70, %69 : vector<16x1xf32>
        %c0_31 = arith.constant 0 : index
        %c0_32 = arith.constant 0 : index
        %72 = vector.load %arg12[%c0_31, %c0_32] : memref<16x1xf32, #tpu.memory_space<vmem>>, vector<16x1xf32>
        %c0_33 = arith.constant 0 : index
        %c0_34 = arith.constant 0 : index
        %73 = vector.load %arg11[%c0_33, %c0_34] : memref<16x1xf32, #tpu.memory_space<vmem>>, vector<16x1xf32>
        %74 = arith.subf %73, %71 : vector<16x1xf32>
        %75 = math.exp %74 : vector<16x1xf32>
        %76 = arith.mulf %72, %75 : vector<16x1xf32>
        %77 = vector.broadcast %71 : vector<16x1xf32> to vector<16x128xf32>
        %78 = arith.subf %67, %77 : vector<16x128xf32>
        %79 = math.exp %78 : vector<16x128xf32>
        %cst_35 = arith.constant dense<0.000000e+00> : vector<16xf32>
        %80 = vector.multi_reduction <add>, %79, %cst_35 [1] : vector<16x128xf32> to vector<16xf32>
        %81 = vector.shape_cast %80 : vector<16xf32> to vector<16x1xf32>
        %82 = arith.addf %76, %81 : vector<16x1xf32>
        %c0_36 = arith.constant 0 : index
        %c0_37 = arith.constant 0 : index
        %83 = vector.load %arg12[%c0_36, %c0_37] : memref<16x1xf32, #tpu.memory_space<vmem>>, vector<16x1xf32>
        tpu.vector_store %arg12[%c0_36, %c0_37], %82 {strides = array<i32>} : memref<16x1xf32, #tpu.memory_space<vmem>>, vector<16x1xf32>,
        %c0_38 = arith.constant 0 : index
        %c0_39 = arith.constant 0 : index
        %84 = vector.load %arg11[%c0_38, %c0_39] : memref<16x1xf32, #tpu.memory_space<vmem>>, vector<16x1xf32>
        tpu.vector_store %arg11[%c0_38, %c0_39], %71 {strides = array<i32>} : memref<16x1xf32, #tpu.memory_space<vmem>>, vector<16x1xf32>,
      } else {
      }
    } else {
    }
    %c0_i32_4 = arith.constant 0 : i32
    %15 = arith.cmpi eq, %arg2, %c0_i32_4 : i32
    %16 = arith.extui %15 : i1 to i32
    %c0_i32_5 = arith.constant 0 : i32
    %17 = arith.cmpi ne, %16, %c0_i32_5 : i32
    scf.if %17 {
      %c0_6 = arith.constant 0 : index
      %c0_7 = arith.constant 0 : index
      %18 = vector.load %arg11[%c0_6, %c0_7] : memref<16x1xf32, #tpu.memory_space<vmem>>, vector<16x1xf32>
      %c0_8 = arith.constant 0 : index
      %c0_9 = arith.constant 0 : index
      %19 = vector.load %arg12[%c0_8, %c0_9] : memref<16x1xf32, #tpu.memory_space<vmem>>, vector<16x1xf32>
      %20 = math.log %19 : vector<16x1xf32>
      %21 = arith.addf %18, %20 : vector<16x1xf32>
      %c0_10 = arith.constant 0 : index
      %c0_11 = arith.constant 0 : index
      %c0_12 = arith.constant 0 : index
      %c0_13 = arith.constant 0 : index
      %22 = vector.load %arg7[%c0_10, %c0_11, %c0_12, %c0_13] : memref<1x1x16x1xf32, #tpu.memory_space<vmem>>, vector<1x1x16x1xf32>
      %23 = vector.shape_cast %22 : vector<1x1x16x1xf32> to vector<16x1xf32>
      %24 = arith.subf %21, %23 : vector<16x1xf32>
      %25 = tpu.iota {dimensions = array<i32: 0>} : vector<16x1xi32>
      %26 = vector.broadcast %6 : i32 to vector<16x1xi32>
      %27 = arith.addi %25, %26 : vector<16x1xi32>
      %c0_i32_14 = arith.constant 0 : i32
      %28 = vector.broadcast %c0_i32_14 : i32 to vector<16x1xi32>
      %29 = arith.cmpi eq, %27, %28 : vector<16x1xi32>
      %c0_15 = arith.constant 0 : index
      %c0_16 = arith.constant 0 : index
      %c0_17 = arith.constant 0 : index
      %c0_18 = arith.constant 0 : index
      %30 = vector.load %arg6[%c0_15, %c0_16, %c0_17, %c0_18] : memref<1x1x16x1xf32, #tpu.memory_space<vmem>>, vector<1x1x16x1xf32>
      %31 = vector.shape_cast %30 : vector<1x1x16x1xf32> to vector<16x1xf32>
      %32 = arith.mulf %24, %31 : vector<16x1xf32>
      %cst = arith.constant 0.000000e+00 : f32
      %33 = vector.broadcast %cst : f32 to vector<16x1xf32>
      %34 = arith.select %29, %33, %32 : vector<16x1xi1>, vector<16x1xf32>
      %c0_19 = arith.constant 0 : index
      %c0_20 = arith.constant 0 : index
      %c0_21 = arith.constant 0 : index
      %c0_22 = arith.constant 0 : index
      %35 = vector.load %arg10[%c0_19, %c0_20, %c0_21, %c0_22] : memref<1x1x16x1xf32, #tpu.memory_space<vmem>>, vector<1x1x16x1xf32>
      %36 = vector.shape_cast %35 : vector<1x1x16x1xf32> to vector<16x1xf32>
      %37 = vector.shape_cast %34 : vector<16x1xf32> to vector<1x1x16x1xf32>
      tpu.vector_store %arg10[%c0_19, %c0_20, %c0_21, %c0_22], %37 {strides = array<i32>} : memref<1x1x16x1xf32, #tpu.memory_space<vmem>>, vector<1x1x16x1xf32>,
    } else {
    }
    return
  }
  func.func @transform_0(%arg0: i32, %arg1: i32, %arg2: i32) -> i32 {
    %c0_i32 = arith.constant 0 : i32
    %c0_i32_0 = arith.constant 0 : i32
    return %c0_i32 : i32
  }
  func.func @transform_1(%arg0: i32, %arg1: i32, %arg2: i32) -> (i32, i32, i32, i32) {
    %c0_i32 = arith.constant 0 : i32
    %c0_i32_0 = arith.constant 0 : i32
    %c0_i32_1 = arith.constant 0 : i32
    return %arg0, %arg1, %c0_i32, %c0_i32_0 : i32, i32, i32, i32
  }
  func.func @transform_2(%arg0: i32, %arg1: i32, %arg2: i32) -> (i32, i32, i32, i32) {
    %c0_i32 = arith.constant 0 : i32
    %c0_i32_0 = arith.constant 0 : i32
    %c0_i32_1 = arith.constant 0 : i32
    return %arg0, %arg1, %c0_i32, %c0_i32_0 : i32, i32, i32, i32
  }
  func.func @transform_3(%arg0: i32, %arg1: i32, %arg2: i32) -> (i32, i32, i32, i32) {
    %c0_i32 = arith.constant 0 : i32
    %c0_i32_0 = arith.constant 0 : i32
    %c0_i32_1 = arith.constant 0 : i32
    return %arg0, %arg1, %c0_i32, %c0_i32_0 : i32, i32, i32, i32
  }
  func.func @transform_4(%arg0: i32, %arg1: i32, %arg2: i32) -> (i32, i32, i32, i32) {
    %c0_i32 = arith.constant 0 : i32
    %c0_i32_0 = arith.constant 0 : i32
    %c0_i32_1 = arith.constant 0 : i32
    return %arg0, %arg1, %c0_i32, %c0_i32_0 : i32, i32, i32, i32
  }
  func.func @transform_5(%arg0: i32, %arg1: i32, %arg2: i32) -> (i32, i32, i32, i32) {
    %c0_i32 = arith.constant 0 : i32
    %c0_i32_0 = arith.constant 0 : i32
    %c0_i32_1 = arith.constant 0 : i32
    return %arg0, %arg2, %c0_i32, %c0_i32_0 : i32, i32, i32, i32
  }
  func.func @transform_6(%arg0: i32, %arg1: i32, %arg2: i32) -> (i32, i32, i32, i32) {
    %c0_i32 = arith.constant 0 : i32
    %c0_i32_0 = arith.constant 0 : i32
    %c0_i32_1 = arith.constant 0 : i32
    return %arg0, %arg2, %c0_i32, %c0_i32_0 : i32, i32, i32, i32
  }
  func.func @transform_7(%arg0: i32, %arg1: i32, %arg2: i32) -> (i32, i32, i32, i32) {
    %c0_i32 = arith.constant 0 : i32
    %c0_i32_0 = arith.constant 0 : i32
    %c0_i32_1 = arith.constant 0 : i32
    return %arg0, %arg1, %c0_i32, %c0_i32_0 : i32, i32, i32, i32
  }
}

</mosaic_0001>

<llo_original>
// kernel: tpu_custom_call.1
$region0: #{tpu_custom_call.1}
  #allocation0 [shape = 'u32[]', space=smem, size = 0x4, offset = 0x4, fixed_abs, tag = 'smem constant byte address 0x4 - core index']
  #allocation1 [shape = 'u32[144,128]{1,0:T(1,128)}', space=vmem, size = 0x12000, scoped, tag = 'internal scratch']
  #allocation2 [shape = 'f32[16,1]{1,0:T(8,128)}', space=vmem, size = 0x2000, scoped, tag = 'scratch operand']
  #allocation3 [shape = 'f32[16,1]{1,0:T(8,128)}', space=vmem, size = 0x2000, scoped, tag = 'scratch operand']
  %s0 = inlined_call_operand.vmem [shape: f32[3], index: 0, kind: input, shape index: {}]
  %s1 = inlined_call_operand.vmem [shape: f32[4,1,16,1], index: 1, kind: input, shape index: {}]
  %s2 = inlined_call_operand.vmem [shape: f32[4,1,16,8], index: 2, kind: input, shape index: {}]
  %s3 = inlined_call_operand.vmem [shape: f32[4,1,16,1], index: 3, kind: input, shape index: {}]
  %s4 = inlined_call_operand.vmem [shape: f32[4,1,16,1], index: 4, kind: input, shape index: {}]
  %s5 = inlined_call_operand.vmem [shape: f32[4,1,1,128], index: 5, kind: input, shape index: {}]
  %s6 = inlined_call_operand.vmem [shape: f32[4,1,8,128], index: 6, kind: input, shape index: {}]
  %s7 = inlined_call_operand.vmem [shape: f32[4,1,16,1], index: 7, kind: output, shape index: {}]
  %s8 = sld [smem:[#allocation0]]
  $region85: #{tpu_custom_call.1} parent=0
    _
  %s10 = ssub.s32 1, %s8
  %s11 = scalar_select 0, %s10, %s8
  $region1: #{tpu_custom_call.1} parent=0
    #allocation4 [shape = 'u8[512]{0}', space=smem, size = 0x200, scoped, tag = 'input window, operand 0, single buffered']
    #allocation5 [shape = 's32[2]{0}', space=sflag, size = 0x8, scoped, tag = 'scoped memory for tpu_custom_call.1']
    %12 = vsyncpa [#allocation5], 0
    loop: start=0, step=1, limit=6
    $region2: #{tpu_custom_call.1} parent=1 // loop_pre_header
      _
    $region3: #{tpu_custom_call.1} parent=1 // loop_header
      %s14 = sphi 0, %s18
      %p15 = scmp.ge.s32.totalorder %s14, 6
      %s21 = sphi 0, %s40
      %s22 = sphi 0, %s36
      %s23 = sphi 0, %s32
      %s24 = sphi 0, %s21
      %s25 = sphi 0, %s22
      %s26 = sphi 0, %s23
      %s27 = sphi 0, %s24
      %s28 = sphi 0, %s25
      %s29 = sphi 0, %s26
      %s41 = sphi 0, %s41
      %s43 = sphi 0, %s41
      %s44 = sphi 0, %s43
      %s58 = sphi 0, %s44
      %s66 = sphi 0, %s68
      %s69 = sphi 0, %s66
      %s70 = sphi 0, %s69
      %s86 = sphi 0, %s70
      %s94 = sphi 0, %s96
      %s97 = sphi 0, %s94
      %s98 = sphi 0, %s97
      %s114 = sphi 0, %s98
      %s122 = sphi 0, %s124
      %s125 = sphi 0, %s122
      %s126 = sphi 0, %s125
      %s142 = sphi 0, %s126
      %s150 = sphi 0, %s152
      %s153 = sphi 0, %s150
      %s154 = sphi 0, %s153
      %s170 = sphi 0, %s154
      %s178 = sphi 0, %s180
      %s181 = sphi 0, %s178
      %s182 = sphi 0, %s181
      %s198 = sphi 0, %s182
      %s206 = sphi 0, %s208
      %s209 = sphi 0, %s206
      %s210 = sphi 0, %s209
      %s226 = sphi 0, %s210
      %s234 = sphi 0, %s236
      %s237 = sphi 0, %s234
      %s238 = sphi 0, %s237
      %s254 = sphi 0, %s238
    $region4: #{tpu_custom_call.1} parent=1 // loop_header_branch
      %17 = sbr.rel (%p15) target = $region8
    $region5: #{tpu_custom_call.1} parent=1 // loop_body
      %s19 = ssub.s32 %s14, 1
      %s20 = ssub.s32 %s14, 2
      %s30 = sadd.s32 1, %s23
      %p31 = scmp.ge.s32.totalorder %s30, 1
      %s32 = scalar_select %p31, 0, %s30
      %s33 = sadd.s32 1, %s22
      %s34 = scalar_select %p31, %s33, %s22
      %p35 = scmp.ge.s32.totalorder %s34, 1
      %s36 = scalar_select %p35, 0, %s34
      %s37 = sadd.s32 1, %s21
      %s38 = scalar_select %p35, %s37, %s21
      %p39 = scmp.ge.s32.totalorder %s38, 4
      %s40 = scalar_select %p39, 0, %s38
      %s42 = sadd.s32 %s41, 1
      %p45 = scmp.eq.s32.totalorder %s14, 3
      %p46 = scmp.ne.s32.totalorder %s41, %s43
      %p47 = scmp.eq.s32.totalorder %s14, 0
      %p48 = por %p46, %p47
      %p49 = scmp.ne.s32.totalorder %s41, %s43
      %p50 = scmp.eq.s32.totalorder %s19, 3
      %p51 = por %p49, %p50
      %p52 = scmp.ne.s32.totalorder %s43, %s44
      %p53 = scmp.eq.s32.totalorder %s19, 0
      %p54 = por %p52, %p53
      %p55 = scmp.ne.s32.totalorder %s43, %s44
      %p56 = scmp.eq.s32.totalorder %s20, 3
      %p57 = por %p55, %p56
      %p59 = scmp.ne.s32.totalorder %s44, %s58
      %p60 = scmp.eq.s32.totalorder %s20, 0
      %p61 = por %p59, %p60
      %s62 = ssub.s32 %s21, %s40
      %s63 = ssub.s32 %s22, %s36
      %s64 = sor.u32 %s62, %s63
      %p65 = scmp.eq.s32.totalorder %s64, 0
      %s67 = sadd.s32 %s66, 1
      %s68 = scalar_select %p65, %s66, %s67
      %p71 = pneg %p65
      %p72 = scmp.eq.s32.totalorder %s14, 3
      %p73 = por %p71, %p72
      %p74 = scmp.ne.s32.totalorder %s66, %s69
      %p75 = scmp.eq.s32.totalorder %s14, 0
      %p76 = por %p74, %p75
      %p77 = scmp.ne.s32.totalorder %s66, %s69
      %p78 = scmp.eq.s32.totalorder %s19, 3
      %p79 = por %p77, %p78
      %p80 = scmp.ne.s32.totalorder %s69, %s70
      %p81 = scmp.eq.s32.totalorder %s19, 0
      %p82 = por %p80, %p81
      %p83 = scmp.ne.s32.totalorder %s69, %s70
      %p84 = scmp.eq.s32.totalorder %s20, 3
      %p85 = por %p83, %p84
      %p87 = scmp.ne.s32.totalorder %s70, %s86
      %p88 = scmp.eq.s32.totalorder %s20, 0
      %p89 = por %p87, %p88
      %s90 = ssub.s32 %s21, %s40
      %s91 = ssub.s32 %s22, %s36
      %s92 = sor.u32 %s90, %s91
      %p93 = scmp.eq.s32.totalorder %s92, 0
      %s95 = sadd.s32 %s94, 1
      %s96 = scalar_select %p93, %s94, %s95
      %p99 = pneg %p93
      %p100 = scmp.eq.s32.totalorder %s14, 3
      %p101 = por %p99, %p100
      %p102 = scmp.ne.s32.totalorder %s94, %s97
      %p103 = scmp.eq.s32.totalorder %s14, 0
      %p104 = por %p102, %p103
      %p105 = scmp.ne.s32.totalorder %s94, %s97
      %p106 = scmp.eq.s32.totalorder %s19, 3
      %p107 = por %p105, %p106
      %p108 = scmp.ne.s32.totalorder %s97, %s98
      %p109 = scmp.eq.s32.totalorder %s19, 0
      %p110 = por %p108, %p109
      %p111 = scmp.ne.s32.totalorder %s97, %s98
      %p112 = scmp.eq.s32.totalorder %s20, 3
      %p113 = por %p111, %p112
      %p115 = scmp.ne.s32.totalorder %s98, %s114
      %p116 = scmp.eq.s32.totalorder %s20, 0
      %p117 = por %p115, %p116
      %s118 = ssub.s32 %s21, %s40
      %s119 = ssub.s32 %s22, %s36
      %s120 = sor.u32 %s118, %s119
      %p121 = scmp.eq.s32.totalorder %s120, 0
      %s123 = sadd.s32 %s122, 1
      %s124 = scalar_select %p121, %s122, %s123
      %p127 = pneg %p121
      %p128 = scmp.eq.s32.totalorder %s14, 3
      %p129 = por %p127, %p128
      %p130 = scmp.ne.s32.totalorder %s122, %s125
      %p131 = scmp.eq.s32.totalorder %s14, 0
      %p132 = por %p130, %p131
      %p133 = scmp.ne.s32.totalorder %s122, %s125
      %p134 = scmp.eq.s32.totalorder %s19, 3
      %p135 = por %p133, %p134
      %p136 = scmp.ne.s32.totalorder %s125, %s126
      %p137 = scmp.eq.s32.totalorder %s19, 0
      %p138 = por %p136, %p137
      %p139 = scmp.ne.s32.totalorder %s125, %s126
      %p140 = scmp.eq.s32.totalorder %s20, 3
      %p141 = por %p139, %p140
      %p143 = scmp.ne.s32.totalorder %s126, %s142
      %p144 = scmp.eq.s32.totalorder %s20, 0
      %p145 = por %p143, %p144
      %s146 = ssub.s32 %s21, %s40
      %s147 = ssub.s32 %s22, %s36
      %s148 = sor.u32 %s146, %s147
      %p149 = scmp.eq.s32.totalorder %s148, 0
      %s151 = sadd.s32 %s150, 1
      %s152 = scalar_select %p149, %s150, %s151
      %p155 = pneg %p149
      %p156 = scmp.eq.s32.totalorder %s14, 3
      %p157 = por %p155, %p156
      %p158 = scmp.ne.s32.totalorder %s150, %s153
      %p159 = scmp.eq.s32.totalorder %s14, 0
      %p160 = por %p158, %p159
      %p161 = scmp.ne.s32.totalorder %s150, %s153
      %p162 = scmp.eq.s32.totalorder %s19, 3
      %p163 = por %p161, %p162
      %p164 = scmp.ne.s32.totalorder %s153, %s154
      %p165 = scmp.eq.s32.totalorder %s19, 0
      %p166 = por %p164, %p165
      %p167 = scmp.ne.s32.totalorder %s153, %s154
      %p168 = scmp.eq.s32.totalorder %s20, 3
      %p169 = por %p167, %p168
      %p171 = scmp.ne.s32.totalorder %s154, %s170
      %p172 = scmp.eq.s32.totalorder %s20, 0
      %p173 = por %p171, %p172
      %s174 = ssub.s32 %s21, %s40
      %s175 = ssub.s32 %s23, %s32
      %s176 = sor.u32 %s174, %s175
      %p177 = scmp.eq.s32.totalorder %s176, 0
      %s179 = sadd.s32 %s178, 1
      %s180 = scalar_select %p177, %s178, %s179
      %p183 = pneg %p177
      %p184 = scmp.eq.s32.totalorder %s14, 3
      %p185 = por %p183, %p184
      %p186 = scmp.ne.s32.totalorder %s178, %s181
      %p187 = scmp.eq.s32.totalorder %s14, 0
      %p188 = por %p186, %p187
      %p189 = scmp.ne.s32.totalorder %s178, %s181
      %p190 = scmp.eq.s32.totalorder %s19, 3
      %p191 = por %p189, %p190
      %p192 = scmp.ne.s32.totalorder %s181, %s182
      %p193 = scmp.eq.s32.totalorder %s19, 0
      %p194 = por %p192, %p193
      %p195 = scmp.ne.s32.totalorder %s181, %s182
      %p196 = scmp.eq.s32.totalorder %s20, 3
      %p197 = por %p195, %p196
      %p199 = scmp.ne.s32.totalorder %s182, %s198
      %p200 = scmp.eq.s32.totalorder %s20, 0
      %p201 = por %p199, %p200
      %s202 = ssub.s32 %s21, %s40
      %s203 = ssub.s32 %s23, %s32
      %s204 = sor.u32 %s202, %s203
      %p205 = scmp.eq.s32.totalorder %s204, 0
      %s207 = sadd.s32 %s206, 1
      %s208 = scalar_select %p205, %s206, %s207
      %p211 = pneg %p205
      %p212 = scmp.eq.s32.totalorder %s14, 3
      %p213 = por %p211, %p212
      %p214 = scmp.ne.s32.totalorder %s206, %s209
      %p215 = scmp.eq.s32.totalorder %s14, 0
      %p216 = por %p214, %p215
      %p217 = scmp.ne.s32.totalorder %s206, %s209
      %p218 = scmp.eq.s32.totalorder %s19, 3
      %p219 = por %p217, %p218
      %p220 = scmp.ne.s32.totalorder %s209, %s210
      %p221 = scmp.eq.s32.totalorder %s19, 0
      %p222 = por %p220, %p221
      %p223 = scmp.ne.s32.totalorder %s209, %s210
      %p224 = scmp.eq.s32.totalorder %s20, 3
      %p225 = por %p223, %p224
      %p227 = scmp.ne.s32.totalorder %s210, %s226
      %p228 = scmp.eq.s32.totalorder %s20, 0
      %p229 = por %p227, %p228
      %s230 = ssub.s32 %s21, %s40
      %s231 = ssub.s32 %s22, %s36
      %s232 = sor.u32 %s230, %s231
      %p233 = scmp.eq.s32.totalorder %s232, 0
      %s235 = sadd.s32 %s234, 1
      %s236 = scalar_select %p233, %s234, %s235
      %p239 = pneg %p233
      %p240 = scmp.eq.s32.totalorder %s14, 3
      %p241 = por %p239, %p240
      %p242 = scmp.ne.s32.totalorder %s234, %s237
      %p243 = scmp.eq.s32.totalorder %s14, 0
      %p244 = por %p242, %p243
      %p245 = scmp.ne.s32.totalorder %s234, %s237
      %p246 = scmp.eq.s32.totalorder %s19, 3
      %p247 = por %p245, %p246
      %p248 = scmp.ne.s32.totalorder %s237, %s238
      %p249 = scmp.eq.s32.totalorder %s19, 0
      %p250 = por %p248, %p249
      %p251 = scmp.ne.s32.totalorder %s237, %s238
      %p252 = scmp.eq.s32.totalorder %s20, 3
      %p253 = por %p251, %p252
      %p255 = scmp.ne.s32.totalorder %s238, %s254
      %p256 = scmp.eq.s32.totalorder %s20, 0
      %p257 = por %p255, %p256
      %p258 = scmp.le.s32.totalorder 1, %s14
      %p259 = scmp.lt.s32.totalorder %s14, 5
      %p260 = pnand %p258, %p259
      %p261 = pneg %p260
      // Predicated region
      $region9: #{tpu_custom_call.1} parent=5 // pred_check
        _
      $region10: #{tpu_custom_call.1} parent=5 // pred_check_branch
        %263 = sbr.rel (%p260) target = $region12
      $region11: #{tpu_custom_call.1} parent=5 // pred_region
        %s264 = ssub.s32 %s14, 1
        // Predicated region
        $region13: #{tpu_custom_call.1} parent=11 // pred_check
          %p265 = pneg %p54
        $region14: #{tpu_custom_call.1} parent=11 // pred_check_branch
          %267 = sbr.rel (%p265) target = $region16
        $region15: #{tpu_custom_call.1} parent=11 // pred_region
          %s269 = ssub.s32 16, 16
          %270 = vsyncadd [#allocation5], %s269
          %s272 = sshll.u32 %s0, 4
          %s273 = int_to_ptr.vmem [resolvable:$true] %s272
          %275 = dma.vmem_to_smem %s273, 16, [#allocation4], [#allocation5]
        $region16: #{tpu_custom_call.1} parent=11 // pred_fallthru
          _
      $region12: #{tpu_custom_call.1} parent=5 // pred_fallthru
        _
      %p276 = scmp.lt.s32.totalorder %s14, 4
      // Predicated region
      $region17: #{tpu_custom_call.1} parent=5 // pred_check
        %p277 = pneg %p276
      $region18: #{tpu_custom_call.1} parent=5 // pred_check_branch
        %279 = sbr.rel (%p277) target = $region20
      $region19: #{tpu_custom_call.1} parent=5 // pred_region
        // Predicated region
        $region21: #{tpu_custom_call.1} parent=19 // pred_check
          %p280 = pneg %p76
        $region22: #{tpu_custom_call.1} parent=19 // pred_check_branch
          %282 = sbr.rel (%p280) target = $region24
        $region23: #{tpu_custom_call.1} parent=19 // pred_region
          %p283 = scmp.lt.s32.totalorder %s21, 3
          %s284 = scalar_select %p283, %s21, 3
          %p285 = scmp.lt.s32.totalorder %s22, 0
          %s286 = scalar_select %p285, %s22, 0
          %s287 = smul.addr %s286, 2
          %s288 = smul.addr %s284, 2
          %s289 = sadd.s32 %s287, %s288
          %s290 = smul.addr %s289, 8
          %s291 = scalar_lea.vmem %s1, %s290
        $region24: #{tpu_custom_call.1} parent=19 // pred_fallthru
          _
        // Predicated region
        $region25: #{tpu_custom_call.1} parent=19 // pred_check
          %p292 = pneg %p104
        $region26: #{tpu_custom_call.1} parent=19 // pred_check_branch
          %294 = sbr.rel (%p292) target = $region28
        $region27: #{tpu_custom_call.1} parent=19 // pred_region
          %p295 = scmp.lt.s32.totalorder %s21, 3
          %s296 = scalar_select %p295, %s21, 3
          %p297 = scmp.lt.s32.totalorder %s22, 0
          %s298 = scalar_select %p297, %s22, 0
          %s299 = smul.addr %s298, 2
          %s300 = smul.addr %s296, 2
          %s301 = sadd.s32 %s299, %s300
          %s302 = smul.addr %s301, 8
          %s303 = scalar_lea.vmem %s2, %s302
        $region28: #{tpu_custom_call.1} parent=19 // pred_fallthru
          _
        // Predicated region
        $region29: #{tpu_custom_call.1} parent=19 // pred_check
          %p304 = pneg %p132
        $region30: #{tpu_custom_call.1} parent=19 // pred_check_branch
          %306 = sbr.rel (%p304) target = $region32
        $region31: #{tpu_custom_call.1} parent=19 // pred_region
          %p307 = scmp.lt.s32.totalorder %s21, 3
          %s308 = scalar_select %p307, %s21, 3
          %p309 = scmp.lt.s32.totalorder %s22, 0
          %s310 = scalar_select %p309, %s22, 0
          %s311 = smul.addr %s310, 2
          %s312 = smul.addr %s308, 2
          %s313 = sadd.s32 %s311, %s312
          %s314 = smul.addr %s313, 8
          %s315 = scalar_lea.vmem %s3, %s314
        $region32: #{tpu_custom_call.1} parent=19 // pred_fallthru
          _
        // Predicated region
        $region33: #{tpu_custom_call.1} parent=19 // pred_check
          %p316 = pneg %p160
        $region34: #{tpu_custom_call.1} parent=19 // pred_check_branch
          %318 = sbr.rel (%p316) target = $region36
        $region35: #{tpu_custom_call.1} parent=19 // pred_region
          %p319 = scmp.lt.s32.totalorder %s21, 3
          %s320 = scalar_select %p319, %s21, 3
          %p321 = scmp.lt.s32.totalorder %s22, 0
          %s322 = scalar_select %p321, %s22, 0
          %s323 = smul.addr %s322, 2
          %s324 = smul.addr %s320, 2
          %s325 = sadd.s32 %s323, %s324
          %s326 = smul.addr %s325, 8
          %s327 = scalar_lea.vmem %s4, %s326
        $region36: #{tpu_custom_call.1} parent=19 // pred_fallthru
          _
        // Predicated region
        $region37: #{tpu_custom_call.1} parent=19 // pred_check
          %p328 = pneg %p188
        $region38: #{tpu_custom_call.1} parent=19 // pred_check_branch
          %330 = sbr.rel (%p328) target = $region40
        $region39: #{tpu_custom_call.1} parent=19 // pred_region
          %p331 = scmp.lt.s32.totalorder %s21, 3
          %s332 = scalar_select %p331, %s21, 3
          %p333 = scmp.lt.s32.totalorder %s23, 0
          %s334 = scalar_select %p333, %s23, 0
          %s335 = sadd.s32 %s334, %s332
          %s336 = scalar_lea.vmem %s5, %s335
        $region40: #{tpu_custom_call.1} parent=19 // pred_fallthru
          _
        // Predicated region
        $region41: #{tpu_custom_call.1} parent=19 // pred_check
          %p337 = pneg %p216
        $region42: #{tpu_custom_call.1} parent=19 // pred_check_branch
          %339 = sbr.rel (%p337) target = $region44
        $region43: #{tpu_custom_call.1} parent=19 // pred_region
          %p340 = scmp.lt.s32.totalorder %s21, 3
          %s341 = scalar_select %p340, %s21, 3
          %p342 = scmp.lt.s32.totalorder %s23, 0
          %s343 = scalar_select %p342, %s23, 0
          %s344 = sadd.s32 %s343, %s341
          %s345 = smul.addr %s344, 8
          %s346 = scalar_lea.vmem %s6, %s345
        $region44: #{tpu_custom_call.1} parent=19 // pred_fallthru
          _
      $region20: #{tpu_custom_call.1} parent=5 // pred_fallthru
        _
      %p347 = scmp.le.s32.totalorder 1, %s14
      %p348 = scmp.lt.s32.totalorder %s14, 5
      %p349 = pnand %p347, %p348
      %p350 = pneg %p349
      // Predicated region
      $region45: #{tpu_custom_call.1} parent=5 // pred_check
        _
      $region46: #{tpu_custom_call.1} parent=5 // pred_check_branch
        %352 = sbr.rel (%p349) target = $region48
      $region47: #{tpu_custom_call.1} parent=5 // pred_region
        %s353 = ssub.s32 %s14, 1
        // Predicated region
        $region49: #{tpu_custom_call.1} parent=47 // pred_check
          %p354 = pneg %p54
        $region50: #{tpu_custom_call.1} parent=47 // pred_check_branch
          %356 = sbr.rel (%p354) target = $region52
        $region51: #{tpu_custom_call.1} parent=47 // pred_region
          %357 = dma.done [#allocation5], 16
        $region52: #{tpu_custom_call.1} parent=47 // pred_fallthru
          _
        %358 = sfence
        %p359 = pneg %p54
        %p360 = pneg %p51
        %p361 = scmp.lt.s32.totalorder %s24, 3
        %s362 = scalar_select %p361, %s24, 3
        %p363 = scmp.lt.s32.totalorder %s25, 0
        %s364 = scalar_select %p363, %s25, 0
        %s365 = smul.addr %s364, 2
        %s366 = smul.addr %s362, 2
        %s367 = sadd.s32 %s365, %s366
        %s368 = smul.addr %s367, 8
        %s369 = scalar_lea.vmem %s1, %s368
        %p370 = pneg %p82
        %p371 = pneg %p79
        %p372 = scmp.lt.s32.totalorder %s24, 3
        %s373 = scalar_select %p372, %s24, 3
        %p374 = scmp.lt.s32.totalorder %s25, 0
        %s375 = scalar_select %p374, %s25, 0
        %s376 = smul.addr %s375, 2
        %s377 = smul.addr %s373, 2
        %s378 = sadd.s32 %s376, %s377
        %s379 = smul.addr %s378, 8
        %s380 = scalar_lea.vmem %s2, %s379
        %p381 = pneg %p110
        %p382 = pneg %p107
        %p383 = scmp.lt.s32.totalorder %s24, 3
        %s384 = scalar_select %p383, %s24, 3
        %p385 = scmp.lt.s32.totalorder %s25, 0
        %s386 = scalar_select %p385, %s25, 0
        %s387 = smul.addr %s386, 2
        %s388 = smul.addr %s384, 2
        %s389 = sadd.s32 %s387, %s388
        %s390 = smul.addr %s389, 8
        %s391 = scalar_lea.vmem %s3, %s390
        %p392 = pneg %p138
        %p393 = pneg %p135
        %p394 = scmp.lt.s32.totalorder %s24, 3
        %s395 = scalar_select %p394, %s24, 3
        %p396 = scmp.lt.s32.totalorder %s25, 0
        %s397 = scalar_select %p396, %s25, 0
        %s398 = smul.addr %s397, 2
        %s399 = smul.addr %s395, 2
        %s400 = sadd.s32 %s398, %s399
        %s401 = smul.addr %s400, 8
        %s402 = scalar_lea.vmem %s4, %s401
        %p403 = pneg %p166
        %p404 = pneg %p163
        %p405 = scmp.lt.s32.totalorder %s24, 3
        %s406 = scalar_select %p405, %s24, 3
        %p407 = scmp.lt.s32.totalorder %s26, 0
        %s408 = scalar_select %p407, %s26, 0
        %s409 = sadd.s32 %s408, %s406
        %s410 = scalar_lea.vmem %s5, %s409
        %p411 = pneg %p194
        %p412 = pneg %p191
        %p413 = scmp.lt.s32.totalorder %s24, 3
        %s414 = scalar_select %p413, %s24, 3
        %p415 = scmp.lt.s32.totalorder %s26, 0
        %s416 = scalar_select %p415, %s26, 0
        %s417 = sadd.s32 %s416, %s414
        %s418 = smul.addr %s417, 8
        %s419 = scalar_lea.vmem %s6, %s418
        %p420 = pneg %p222
        %p421 = pneg %p219
        %p422 = pneg %p250
        %p423 = pneg %p247
        %p424 = scmp.lt.s32.totalorder %s24, 3
        %s425 = scalar_select %p424, %s24, 3
        %p426 = scmp.lt.s32.totalorder %s25, 0
        %s427 = scalar_select %p426, %s25, 0
        %s428 = smul.addr %s427, 2
        %s429 = smul.addr %s425, 2
        %s430 = sadd.s32 %s428, %s429
        %s431 = smul.addr %s430, 8
        %s432 = scalar_lea.vmem %s7, %s431
        %p433 = scmp.lt.s32.totalorder %s24, 3
        %s434 = scalar_select %p433, %s24, 3
        %p435 = scmp.lt.s32.totalorder %s25, 0
        %s436 = scalar_select %p435, %s25, 0
        %s437 = smul.addr %s436, 2
        %s438 = smul.addr %s434, 2
        %s439 = sadd.s32 %s437, %s438
        %s440 = smul.addr %s439, 8
        %s441 = scalar_lea.vmem %s1, %s440
        %p442 = scmp.lt.s32.totalorder %s24, 3
        %s443 = scalar_select %p442, %s24, 3
        %p444 = scmp.lt.s32.totalorder %s25, 0
        %s445 = scalar_select %p444, %s25, 0
        %s446 = smul.addr %s445, 2
        %s447 = smul.addr %s443, 2
        %s448 = sadd.s32 %s446, %s447
        %s449 = smul.addr %s448, 8
        %s450 = scalar_lea.vmem %s2, %s449
        %p451 = scmp.lt.s32.totalorder %s24, 3
        %s452 = scalar_select %p451, %s24, 3
        %p453 = scmp.lt.s32.totalorder %s25, 0
        %s454 = scalar_select %p453, %s25, 0
        %s455 = smul.addr %s454, 2
        %s456 = smul.addr %s452, 2
        %s457 = sadd.s32 %s455, %s456
        %s458 = smul.addr %s457, 8
        %s459 = scalar_lea.vmem %s3, %s458
        %p460 = scmp.lt.s32.totalorder %s24, 3
        %s461 = scalar_select %p460, %s24, 3
        %p462 = scmp.lt.s32.totalorder %s25, 0
        %s463 = scalar_select %p462, %s25, 0
        %s464 = smul.addr %s463, 2
        %s465 = smul.addr %s461, 2
        %s466 = sadd.s32 %s464, %s465
        %s467 = smul.addr %s466, 8
        %s468 = scalar_lea.vmem %s4, %s467
        %p469 = scmp.lt.s32.totalorder %s24, 3
        %s470 = scalar_select %p469, %s24, 3
        %p471 = scmp.lt.s32.totalorder %s26, 0
        %s472 = scalar_select %p471, %s26, 0
        %s473 = sadd.s32 %s472, %s470
        %s474 = scalar_lea.vmem %s5, %s473
        %p475 = scmp.lt.s32.totalorder %s24, 3
        %s476 = scalar_select %p475, %s24, 3
        %p477 = scmp.lt.s32.totalorder %s26, 0
        %s478 = scalar_select %p477, %s26, 0
        %s479 = sadd.s32 %s478, %s476
        %s480 = smul.addr %s479, 8
        %s481 = scalar_lea.vmem %s6, %s480
        %p482 = scmp.lt.s32.totalorder %s24, 3
        %s483 = scalar_select %p482, %s24, 3
        %p484 = scmp.lt.s32.totalorder %s25, 0
        %s485 = scalar_select %p484, %s25, 0
        %s486 = smul.addr %s485, 2
        %s487 = smul.addr %s483, 2
        %s488 = sadd.s32 %s486, %s487
        %s489 = smul.addr %s488, 8
        %s490 = scalar_lea.vmem %s7, %s489
        %s491 = sld [smem:[#allocation4]]
        %s492 = sld [smem:[#allocation4 + $0x1]]
        %s493 = sld [smem:[#allocation4 + $0x2]]
        %p494 = scmp.eq.s32.totalorder %s26, 0
        // Predicated region
        $region53: #{tpu_custom_call.1} parent=47 // pred_check
          %p495 = pneg %p494
        $region54: #{tpu_custom_call.1} parent=47 // pred_check_branch
          %497 = sbr.rel (%p495) target = $region56
        $region55: #{tpu_custom_call.1} parent=47 // pred_region
          %vm498 = vcmask 7168
          %499 = vst.msk [vmem:[#allocation2] sm:$0xff] %vm498, -1e+20
          %500 = vst.msk [vmem:[#allocation2 + $0x8] sm:$0xff] %vm498, -1e+20
          %501 = vst.msk [vmem:[#allocation3] sm:$0xff] %vm498, 0.0
          %502 = vst.msk [vmem:[#allocation3 + $0x8] sm:$0xff] %vm498, 0.0
        $region56: #{tpu_custom_call.1} parent=47 // pred_fallthru
          _
        %s503 = smul.u32 %s25, 16
        %s504 = smul.u32 %s26, 128
        %s505 = sadd.s32 %s503, 15
        %p506 = scmp.lt.s32.totalorder %s504, %s505
        %s507 = sadd.s32 %s504, 128
        %p508 = scmp.le.s32.totalorder %s507, %s503
        // Predicated region
        $region57: #{tpu_custom_call.1} parent=47 // pred_check
          %p509 = pneg %p506
        $region58: #{tpu_custom_call.1} parent=47 // pred_check_branch
          %511 = sbr.rel (%p509) target = $region60
        $region59: #{tpu_custom_call.1} parent=47 // pred_region
          %v512 = vld [vmem:[%s450] sm:$0xff]
          %v513 = vld [vmem:[%s450 + $0x8] sm:$0xff]
          %v514 = vld [vmem:[%s481] sm:$0xff]
          %v515 = vld [vmem:[%s441] sm:$0xff]
          %v516 = vld [vmem:[%s441 + $0x8] sm:$0xff]
          %v517 = vld [vmem:[%s474] sm:$0x1]
          %vm518 = vcmask 64512
          %v520 = vsel %vm518, %v512, 0
          %v523 = vsel %vm518, %v513, 0
          %525 = vmatprep.subr.mxu0 0.0
          %526 = vmatpush1.msra.mxu0 %v514
          %527 = vmatprep.subr.mxu0 0.0
          %528 = vmatpush1.msra.mxu0 0.0
          %529 = vmatprep.subr.mxu0 0.0
          %530 = vmatpush1.msra.mxu0 0.0
          %531 = vmatprep.subr.mxu0 0.0
          %532 = vmatpush1.msra.mxu0 0.0
          %533 = vmatprep.subr.mxu0 0.0
          %534 = vmatpush1.msra.mxu0 0.0
          %535 = vmatprep.subr.mxu0 0.0
          %536 = vmatpush1.msra.mxu0 0.0
          %537 = vmatprep.subr.mxu0 0.0
          %538 = vmatpush1.msra.mxu0 0.0
          %539 = vmatprep.subr.mxu0 0.0
          %540 = vmatpush1.msra.mxu0 0.0
          %541 = vmatprep.subr.mxu0 0.0
          %542 = vmatpush1.msra.mxu0 0.0
          %543 = vmatprep.subr.mxu0 0.0
          %544 = vmatpush1.msra.mxu0 0.0
          %545 = vmatprep.subr.mxu0 0.0
          %546 = vmatpush1.msra.mxu0 0.0
          %547 = vmatprep.subr.mxu0 0.0
          %548 = vmatpush1.msra.mxu0 0.0
          %549 = vmatprep.subr.mxu0 0.0
          %550 = vmatpush1.msra.mxu0 0.0
          %551 = vmatprep.subr.mxu0 0.0
          %552 = vmatpush1.msra.mxu0 0.0
          %553 = vmatprep.subr.mxu0 0.0
          %554 = vmatpush1.msra.mxu0 0.0
          %555 = vmatprep.subr.mxu0 0.0
          %556 = vmatpush1.msra.mxu0 0.0
          %557 = vmatprep.subr.mxu0 0.0
          %558 = vmatpush1.msra.mxu0 0.0
          %559 = vmatprep.subr.mxu0 0.0
          %560 = vmatpush1.msra.mxu0 0.0
          %561 = vmatprep.subr.mxu0 0.0
          %562 = vmatpush1.msra.mxu0 0.0
          %563 = vmatprep.subr.mxu0 0.0
          %564 = vmatpush1.msra.mxu0 0.0
          %565 = vmatprep.subr.mxu0 0.0
          %566 = vmatpush1.msra.mxu0 0.0
          %567 = vmatprep.subr.mxu0 0.0
          %568 = vmatpush1.msra.mxu0 0.0
          %569 = vmatprep.subr.mxu0 0.0
          %570 = vmatpush1.msra.mxu0 0.0
          %571 = vmatprep.subr.mxu0 0.0
          %572 = vmatpush1.msra.mxu0 0.0
          %573 = vmatprep.subr.mxu0 0.0
          %574 = vmatpush1.msra.mxu0 0.0
          %575 = vmatprep.subr.mxu0 0.0
          %576 = vmatpush1.msra.mxu0 0.0
          %577 = vmatprep.subr.mxu0 0.0
          %578 = vmatpush1.msra.mxu0 0.0
          %579 = vmatprep.subr.mxu0 0.0
          %580 = vmatpush1.msra.mxu0 0.0
          %581 = vmatprep.subr.mxu0 0.0
          %582 = vmatpush1.msra.mxu0 0.0
          %583 = vmatprep.subr.mxu0 0.0
          %584 = vmatpush1.msra.mxu0 0.0
          %585 = vmatprep.subr.mxu0 0.0
          %586 = vmatpush1.msra.mxu0 0.0
          %587 = vmatprep.subr.mxu0 0.0
          %588 = vmatpush1.msra.mxu0 0.0
          %589 = vmatprep.mubr.f32.mxu0 0.0
          %590 = vmatmul.mubr.f32.gmra.mrb[0].mxu0 %v520
          %v591 = vpop.f32.mrb[0].mxu0
          %v592 = vadd.f32 0.0, %v591
          %v593 = vpop.f32.mrb[0].mxu0
          %594 = vmatprep.mubr.f32.mxu0 0.0
          %595 = vmatmul.mubr.f32.gmra.mrb[0].mxu0 %v523
          %v596 = vpop.f32.mrb[0].mxu0
          %v597 = vadd.f32 0.0, %v596
          %v598 = vpop.f32.mrb[0].mxu0
          %599 = vdwg.mxu0
          %v600 = vmul.f32 %v512, %v512
          %v601 = vmul.f32 %v513, %v513
          %v602 = vsel %vm518, %v600, 0.0
          %603 = vadd.xlane.f32.xlu0 %v602
          %v604 = vpop.xlane.xlu0 %603
          %v605 = vsel %vm518, %v601, 0.0
          %606 = vadd.xlane.f32.xlu0 %v605
          %v607 = vpop.xlane.xlu0 %606
          %v608 = vmul.f32 %v514, %v514
          %v609 = vrot.slane %v608, 4
          %v610 = vadd.f32 %v608, %v609
          %v611 = vrot.slane %v610, 2
          %v612 = vadd.f32 %v610, %v611
          %v613 = vrot.slane %v612, 1
          %v614 = vadd.f32 %v612, %v613
          %v615 = vstv %s492
          %v616 = vmul.f32 %v615, %v604
          %v617 = vmul.f32 %v615, %v607
          %v618 = vstv %s491
          %v619 = vsub.f32 %v618, %v616
          %v620 = vsub.f32 %v618, %v617
          %v621 = vstv %s493
          %v622 = vmul.f32 %v515, %v621
          %v623 = vmul.f32 %v516, %v621
          %v624 = vsub.f32 %v619, %v622
          %v625 = vsub.f32 %v620, %v623
          %v626 = vmul.f32 %v517, %v621
          %v627 = vmul.f32 %v615, %v614
          %v628 = vsub.f32 %v626, %v627
          %s629 = smul.f32 %s492, 2.0
          %v630 = vstv %s629
          %v631 = vmul.f32 %v630, %v592
          %v632 = vmul.f32 %v630, %v597
          %634 = vset.pattern.permute.xlu0 0
          %635 = vperm.xlu0 %634, %v624
          %v636 = vpop.permute.xlu0 %635
          %639 = vset.pattern.permute.xlu0 0
          %640 = vperm.xlu0 %639, %v625
          %v641 = vpop.permute.xlu0 %640
          %v643 = vadd.f32 %v631, %v636
          %v644 = vadd.f32 %v632, %v641
          %v646 = vlaneseq
          %v647 = vshrl.u32 %v646, 7
          %v648 = vsub.s32 0, %v647
          %v649 = vrot.slane %v628, %v648
          %v651 = vadd.f32 %v643, %v649
          %v652 = vadd.f32 %v644, %v649
          // Predicated region
          $region61: #{tpu_custom_call.1} parent=59 // pred_check
            %p653 = pneg %p508
          $region62: #{tpu_custom_call.1} parent=59 // pred_check_branch
            %655 = sbr.rel (%p653) target = $region64
          $region63: #{tpu_custom_call.1} parent=59 // pred_region
            %656 = vmax.xlane.f32.xlu0 %v651
            %v657 = vpop.xlane.xlu0 %656
            %658 = vmax.xlane.f32.xlu0 %v652
            %v659 = vpop.xlane.xlu0 %658
            %v660 = vld [vmem:[#allocation2] sm:$0xff]
            %v661 = vld [vmem:[#allocation2 + $0x8] sm:$0xff]
            %v662 = vmax.f32 %v660, %v657
            %v663 = vmax.f32 %v661, %v659
            %v664 = vld [vmem:[#allocation3] sm:$0xff]
            %v665 = vld [vmem:[#allocation3 + $0x8] sm:$0xff]
            %v666 = vsub.f32 %v660, %v662
            %v667 = vsub.f32 %v661, %v663
            %v668 = vmul.f32 %v666, 1.442695
            %v669 = vpow.pop %v668
            %v670 = vmul.f32 %v667, 1.442695
            %v671 = vpow.pop %v670
            %v672 = vmul.f32 %v664, %v669
            %v673 = vmul.f32 %v665, %v671
            %675 = vset.pattern.permute.xlu0 0
            %676 = vperm.xlu0 %675, %v662
            %v677 = vpop.permute.xlu0 %676
            %680 = vset.pattern.permute.xlu0 0
            %681 = vperm.xlu0 %680, %v663
            %v682 = vpop.permute.xlu0 %681
            %v684 = vsub.f32 %v651, %v677
            %v685 = vsub.f32 %v652, %v682
            %v686 = vmul.f32 %v684, 1.442695
            %v687 = vpow.pop %v686
            %v688 = vmul.f32 %v685, 1.442695
            %v689 = vpow.pop %v688
            %690 = vadd.xlane.f32.xlu0 %v687
            %v691 = vpop.xlane.xlu0 %690
            %692 = vadd.xlane.f32.xlu0 %v689
            %v693 = vpop.xlane.xlu0 %692
            %v694 = vadd.f32 %v672, %v691
            %v695 = vadd.f32 %v673, %v693
            %vm696 = vcmask 7168
            %697 = vst.msk [vmem:[#allocation3] sm:$0xff] %vm696, %v694
            %698 = vst.msk [vmem:[#allocation3 + $0x8] sm:$0xff] %vm696, %v695
            %699 = vst.msk [vmem:[#allocation2] sm:$0xff] %vm696, %v662
            %700 = vst.msk [vmem:[#allocation2 + $0x8] sm:$0xff] %vm696, %v663
          $region64: #{tpu_custom_call.1} parent=59 // pred_fallthru
            _
          %p701 = scmp.gt.s32.totalorder %s507, %s503
          // Predicated region
          $region65: #{tpu_custom_call.1} parent=59 // pred_check
            %p702 = pneg %p701
          $region66: #{tpu_custom_call.1} parent=59 // pred_check_branch
            %704 = sbr.rel (%p702) target = $region68
          $region67: #{tpu_custom_call.1} parent=59 // pred_region
            %v705 = vlaneseq
            %v706 = vshrl.u32 %v705, 7
            %v707 = vadd.s32 %v706, 8
            %v708 = vstv %s503
            %v709 = vadd.s32 %v706, %v708
            %v710 = vadd.s32 %v707, %v708
            %v711 = vlaneseq
            %v712 = vand.u32 %v711, 127
            %v713 = vstv %s504
            %v714 = vadd.s32 %v712, %v713
            %vm715 = vcmp.lt.s32.totalorder %v714, %v709
            %vm716 = vcmp.lt.s32.totalorder %v714, %v710
            %v717 = vsel %vm715, %v651, -1e+20
            %v718 = vsel %vm716, %v652, -1e+20
            %719 = vmax.xlane.f32.xlu0 %v717
            %v720 = vpop.xlane.xlu0 %719
            %721 = vmax.xlane.f32.xlu0 %v718
            %v722 = vpop.xlane.xlu0 %721
            %v723 = vld [vmem:[#allocation2] sm:$0xff]
            %v724 = vld [vmem:[#allocation2 + $0x8] sm:$0xff]
            %v725 = vmax.f32 %v723, %v720
            %v726 = vmax.f32 %v724, %v722
            %v727 = vld [vmem:[#allocation3] sm:$0xff]
            %v728 = vld [vmem:[#allocation3 + $0x8] sm:$0xff]
            %v729 = vsub.f32 %v723, %v725
            %v730 = vsub.f32 %v724, %v726
            %v731 = vmul.f32 %v729, 1.442695
            %v732 = vpow.pop %v731
            %v733 = vmul.f32 %v730, 1.442695
            %v734 = vpow.pop %v733
            %v735 = vmul.f32 %v727, %v732
            %v736 = vmul.f32 %v728, %v734
            %738 = vset.pattern.permute.xlu0 0
            %739 = vperm.xlu0 %738, %v725
            %v740 = vpop.permute.xlu0 %739
            %743 = vset.pattern.permute.xlu0 0
            %744 = vperm.xlu0 %743, %v726
            %v745 = vpop.permute.xlu0 %744
            %v747 = vsub.f32 %v717, %v740
            %v748 = vsub.f32 %v718, %v745
            %v749 = vmul.f32 %v747, 1.442695
            %v750 = vpow.pop %v749
            %v751 = vmul.f32 %v748, 1.442695
            %v752 = vpow.pop %v751
            %753 = vadd.xlane.f32.xlu0 %v750
            %v754 = vpop.xlane.xlu0 %753
            %755 = vadd.xlane.f32.xlu0 %v752
            %v756 = vpop.xlane.xlu0 %755
            %v757 = vadd.f32 %v735, %v754
            %v758 = vadd.f32 %v736, %v756
            %vm759 = vcmask 7168
            %760 = vst.msk [vmem:[#allocation3] sm:$0xff] %vm759, %v757
            %761 = vst.msk [vmem:[#allocation3 + $0x8] sm:$0xff] %vm759, %v758
            %762 = vst.msk [vmem:[#allocation2] sm:$0xff] %vm759, %v725
            %763 = vst.msk [vmem:[#allocation2 + $0x8] sm:$0xff] %vm759, %v726
          $region68: #{tpu_custom_call.1} parent=59 // pred_fallthru
            _
        $region60: #{tpu_custom_call.1} parent=47 // pred_fallthru
          _
        // Predicated region
        $region69: #{tpu_custom_call.1} parent=47 // pred_check
          %p764 = pneg %p494
        $region70: #{tpu_custom_call.1} parent=47 // pred_check_branch
          %766 = sbr.rel (%p764) target = $region72
        $region71: #{tpu_custom_call.1} parent=47 // pred_region
          %v767 = vld [vmem:[#allocation2] sm:$0xff]
          %v768 = vld [vmem:[#allocation2 + $0x8] sm:$0xff]
          %v769 = vld [vmem:[#allocation3] sm:$0xff]
          %v770 = vld [vmem:[#allocation3 + $0x8] sm:$0xff]
          %v771 = vlog2.pop %v769
          %v772 = vmul.f32 %v771, 0.6931472
          %v773 = vlog2.pop %v770
          %v774 = vmul.f32 %v773, 0.6931472
          %v775 = vadd.f32 %v767, %v772
          %v776 = vadd.f32 %v768, %v774
          %v777 = vld [vmem:[%s468] sm:$0xff]
          %v778 = vld [vmem:[%s468 + $0x8] sm:$0xff]
          %v779 = vsub.f32 %v775, %v777
          %v780 = vsub.f32 %v776, %v778
          %v781 = vlaneseq
          %v782 = vshrl.u32 %v781, 7
          %v783 = vadd.s32 %v782, 8
          %v784 = vstv %s503
          %v785 = vadd.s32 %v782, %v784
          %v786 = vadd.s32 %v783, %v784
          %vm787 = vcmp.eq.s32.totalorder %v785, 0
          %vm788 = vcmp.eq.s32.totalorder %v786, 0
          %v789 = vld [vmem:[%s459] sm:$0xff]
          %v790 = vld [vmem:[%s459 + $0x8] sm:$0xff]
          %v791 = vmul.f32 %v779, %v789
          %v792 = vmul.f32 %v780, %v790
          %v793 = vsel %vm787, 0.0, %v791
          %v794 = vsel %vm788, 0.0, %v792
          %vm795 = vcmask 7168
          %796 = vst.msk [vmem:[%s490] sm:$0xff] %vm795, %v793
          %797 = vst.msk [vmem:[%s490 + $0x8] sm:$0xff] %vm795, %v794
        $region72: #{tpu_custom_call.1} parent=47 // pred_fallthru
          _
        %p798 = scmp.lt.s32.totalorder %s24, 3
        %s799 = scalar_select %p798, %s24, 3
        %p800 = scmp.lt.s32.totalorder %s25, 0
        %s801 = scalar_select %p800, %s25, 0
        %s802 = smul.addr %s801, 2
        %s803 = smul.addr %s799, 2
        %s804 = sadd.s32 %s802, %s803
        %s805 = smul.addr %s804, 8
        %s806 = scalar_lea.vmem %s7, %s805
        // Predicated region
        $region73: #{tpu_custom_call.1} parent=47 // pred_check
          %p807 = pneg %p247
        $region74: #{tpu_custom_call.1} parent=47 // pred_check_branch
          %809 = sbr.rel (%p807) target = $region76
        $region75: #{tpu_custom_call.1} parent=47 // pred_region
          _
        $region76: #{tpu_custom_call.1} parent=47 // pred_fallthru
          _
      $region48: #{tpu_custom_call.1} parent=5 // pred_fallthru
        _
      %p810 = scmp.le.s32.totalorder 2, %s14
      // Predicated region
      $region77: #{tpu_custom_call.1} parent=5 // pred_check
        %p811 = pneg %p810
      $region78: #{tpu_custom_call.1} parent=5 // pred_check_branch
        %813 = sbr.rel (%p811) target = $region80
      $region79: #{tpu_custom_call.1} parent=5 // pred_region
        %s814 = ssub.s32 %s14, 2
        // Predicated region
        $region81: #{tpu_custom_call.1} parent=79 // pred_check
          %p815 = pneg %p253
        $region82: #{tpu_custom_call.1} parent=79 // pred_check_branch
          %817 = sbr.rel (%p815) target = $region84
        $region83: #{tpu_custom_call.1} parent=79 // pred_region
          %p818 = scmp.lt.s32.totalorder %s27, 3
          %s819 = scalar_select %p818, %s27, 3
          %p820 = scmp.lt.s32.totalorder %s28, 0
          %s821 = scalar_select %p820, %s28, 0
          %s822 = smul.addr %s821, 2
          %s823 = smul.addr %s819, 2
          %s824 = sadd.s32 %s822, %s823
          %s825 = smul.addr %s824, 8
          %s826 = scalar_lea.vmem %s7, %s825
        $region84: #{tpu_custom_call.1} parent=79 // pred_fallthru
          _
      $region80: #{tpu_custom_call.1} parent=5 // pred_fallthru
        _
    $region6: #{tpu_custom_call.1} parent=1 // loop_footer
      %s18 = sadd.s32 1, %s14
    $region7: #{tpu_custom_call.1} parent=1 // loop_footer_branch
      %13 = sbr.rel target = $region3
    $region8: #{tpu_custom_call.1} parent=1 // loop_exit
      _
    %827 = vsyncpa [#allocation5], 1
    %s828 = scalar_lea.sflag [#allocation5], 1
    %829 = vsyncpa %s828, 1

</llo_original>
